<compile_context>
chip_gen: v6e
topology: v6e:2x2x1
jax: 0.10.0
libtpu: 0.0.40
codegen_flags: <defaults>
</compile_context>

<pallas_src>
import jax
import jax.numpy as jnp
from jax.experimental import pallas as pl
from jax.experimental.pallas import tpu as pltpu

_LANES = 128


def _mish_kernel(x_ref, o_ref):
    x = x_ref[...]
    xf = x.astype(jnp.float32)
    # tanh(softplus(x)) = d / (d + 2) with d = e*(e+2), e = exp(x).
    # PyTorch softplus (threshold=20) returns x for x > 20, and tanh(x) == 1.0
    # in f32 there, so y = x on that branch.  Clamp the exp argument so the
    # untaken branch never overflows e*(e+2) in f32.
    e = jnp.exp(jnp.minimum(xf, 20.0))
    d = e * (e + 2.0)
    y = jnp.where(xf > 20.0, xf, xf * d / (d + 2.0))
    o_ref[...] = y.astype(o_ref.dtype)


def mish(x: jax.Array, *, tile_rows: int = 4096) -> jax.Array:
    orig_shape = x.shape
    orig_dtype = x.dtype
    n = x.size

    flat = jnp.ravel(x)
    pad = (-n) % _LANES
    if pad:
        # Rare path (total element count not a multiple of 128).  mish(0) == 0
        # so zero padding is harmless; tail is sliced off below.
        flat = jnp.pad(flat, (0, pad))
    rows = flat.size // _LANES
    x2d = flat.reshape(rows, _LANES)

    if rows <= tile_rows:
        # Single block; block_shape == full array dims is always layout-legal.
        tr = rows
        grid = (1,)
    else:
        # Large fixed tile (multiple of 8 rows); Pallas masks the partial
        # last block, so no tile-size shrinking is ever needed.
        tr = tile_rows
        grid = (pl.cdiv(rows, tr),)

    itemsize = jnp.dtype(orig_dtype).itemsize
    cost = pl.CostEstimate(
        flops=6 * n,                      # min/cmp/mul/add/select per element
        transcendentals=2 * n,            # exp + divide per element
        bytes_accessed=2 * n * itemsize,  # read + write, original dtype
    )

    out2d = pl.pallas_call(
        _mish_kernel,
        out_shape=jax.ShapeDtypeStruct((rows, _LANES), orig_dtype),
        grid_spec=pltpu.PrefetchScalarGridSpec(
            num_scalar_prefetch=0,
            grid=grid,
            in_specs=[pl.BlockSpec((tr, _LANES), lambda i: (i, 0))],
            out_specs=pl.BlockSpec((tr, _LANES), lambda i: (i, 0)),
        ),
        compiler_params=pltpu.CompilerParams(
            dimension_semantics=("parallel",),
        ),
        cost_estimate=cost,
    )(x2d)

    out_flat = out2d.reshape(-1)
    if pad:
        out_flat = out_flat[:n]
    return out_flat.reshape(orig_shape)


def mish_ref(x):
    # Independent reference: PyTorch-style threshold-20 softplus, then tanh.
    xf = x.astype(jnp.float32)
    sp = jnp.where(xf > 20.0, xf, jnp.log1p(jnp.exp(jnp.minimum(xf, 20.0))))
    return (xf * jnp.tanh(sp)).astype(x.dtype)


if __name__ == "__main__":
    key = jax.random.PRNGKey(0)
    # NCHW input, consistent with typical conv-net usage of Mish.
    x = jax.random.normal(key, (2, 4, 16, 16), dtype=jnp.float32) * 3.0

    y = mish(x)
    jax.block_until_ready(y)

    y_ref = mish_ref(x)
    assert y.shape == x.shape and y.dtype == x.dtype
    assert jnp.allclose(y, y_ref, atol=1e-5, rtol=1e-5)

    print("KERNEL_OK")
</pallas_src>

<mosaic_0001>
module attributes {stable_mosaic.version = 11 : i64} {
  func.func @_mish_kernel(%arg0: i32, %arg1: memref<16x128xf32, #tpu.memory_space<vmem>>, %arg2: memref<16x128xf32, #tpu.memory_space<vmem>>) attributes {dimension_semantics = [#tpu.dimension_semantics<parallel>], iteration_bounds = array<i64: 1>, scalar_prefetch = 0 : i64, scratch_operands = 0 : i64, tpu.core_type = #tpu.core_type<tc>, window_params = [{transform_indices = @transform_0, window_bounds = array<i64: 16, 128>}, {transform_indices = @transform_1, window_bounds = array<i64: 16, 128>}]} {
    %c0 = arith.constant 0 : index
    %c0_0 = arith.constant 0 : index
    %0 = vector.load %arg1[%c0, %c0_0] : memref<16x128xf32, #tpu.memory_space<vmem>>, vector<16x128xf32>
    %cst = arith.constant 2.000000e+01 : f32
    %1 = vector.broadcast %cst : f32 to vector<16x128xf32>
    %2 = arith.minimumf %0, %1 : vector<16x128xf32>
    %3 = math.exp %2 : vector<16x128xf32>
    %cst_1 = arith.constant 2.000000e+00 : f32
    %4 = vector.broadcast %cst_1 : f32 to vector<16x128xf32>
    %5 = arith.addf %3, %4 : vector<16x128xf32>
    %6 = arith.mulf %3, %5 : vector<16x128xf32>
    %cst_2 = arith.constant 2.000000e+01 : f32
    %7 = vector.broadcast %cst_2 : f32 to vector<16x128xf32>
    %8 = arith.cmpf ogt, %0, %7 : vector<16x128xf32>
    %9 = arith.mulf %0, %6 : vector<16x128xf32>
    %cst_3 = arith.constant 2.000000e+00 : f32
    %10 = vector.broadcast %cst_3 : f32 to vector<16x128xf32>
    %11 = arith.addf %6, %10 : vector<16x128xf32>
    %12 = arith.divf %9, %11 : vector<16x128xf32>
    %13 = arith.select %8, %0, %12 : vector<16x128xi1>, vector<16x128xf32>
    %c0_4 = arith.constant 0 : index
    %c0_5 = arith.constant 0 : index
    %14 = vector.load %arg2[%c0_4, %c0_5] : memref<16x128xf32, #tpu.memory_space<vmem>>, vector<16x128xf32>
    tpu.vector_store %arg2[%c0_4, %c0_5], %13 {strides = array<i32>} : memref<16x128xf32, #tpu.memory_space<vmem>>, vector<16x128xf32>,
    return
  }
  func.func @transform_0(%arg0: i32) -> (i32, i32) {
    %c0_i32 = arith.constant 0 : i32
    %c0_i32_0 = arith.constant 0 : i32
    return %arg0, %c0_i32 : i32, i32
  }
  func.func @transform_1(%arg0: i32) -> (i32, i32) {
    %c0_i32 = arith.constant 0 : i32
    %c0_i32_0 = arith.constant 0 : i32
    return %arg0, %c0_i32 : i32, i32
  }
}

</mosaic_0001>

<llo_original>
// kernel: tpu_custom_call.1
$region0: #{tpu_custom_call.1}
  #allocation0 [shape = 'u32[]', space=smem, size = 0x4, offset = 0x4, fixed_abs, tag = 'smem constant byte address 0x4 - core index']
  #allocation1 [shape = 'u32[144,128]{1,0:T(1,128)}', space=vmem, size = 0x12000, scoped, tag = 'internal scratch']
  %s0 = inlined_call_operand.hbm [shape: f32[16,128], index: 0, kind: input, shape index: {}]
  %s1 = inlined_call_operand.hbm [shape: f32[16,128], index: 1, kind: output, shape index: {}]
  %s2 = sld [smem:[#allocation0]]
  $region18: #{tpu_custom_call.1} parent=0
    _
  %s4 = ssub.s32 1, %s2
  %s5 = scalar_select 0, %s4, %s2
  $region1: #{tpu_custom_call.1} parent=0
    #allocation2 [shape = 'u8[8192]{0}', space=vmem, size = 0x2000, scoped, tag = 'input window, operand 0, single buffered']
    #allocation3 [shape = 's32[1]{0}', space=sflag, size = 0x4, scoped, tag = 'scoped memory for tpu_custom_call.1']
    #allocation4 [shape = 's32[1]{0}', space=sflag, size = 0x4, scoped, tag = 'scoped memory for tpu_custom_call.1']
    #allocation5 [shape = 'u8[8192]{0}', space=vmem, size = 0x2000, scoped, tag = 'output window, operand 0, single buffered']
    %6 = vsyncpa [#allocation3], 0
    %7 = vsyncpa [#allocation4], 0
    // Predicated region
    $region2: #{tpu_custom_call.1} parent=1 // pred_check
      _
    $region3: #{tpu_custom_call.1} parent=1 // pred_check_branch
      %9 = sbr.rel (0) target = $region5
    $region4: #{tpu_custom_call.1} parent=1 // pred_region
      %s11 = ssub.s32 256, 256
      %12 = vsyncadd [#allocation3], %s11
      %s13 = sshll.u32 [#allocation2], 4
      %s14 = int_to_ptr.vmem [resolvable:$true] %s13
      %19 = dma.hbm_to_vmem [thread:$0]  %s0, 256, %s14, [#allocation3], 128, 128, 8
    $region5: #{tpu_custom_call.1} parent=1 // pred_fallthru
      _
    // Predicated region
    $region6: #{tpu_custom_call.1} parent=1 // pred_check
      _
    $region7: #{tpu_custom_call.1} parent=1 // pred_check_branch
      %21 = sbr.rel (0) target = $region9
    $region8: #{tpu_custom_call.1} parent=1 // pred_region
      %22 = dma.done [#allocation3], 256
    $region9: #{tpu_custom_call.1} parent=1 // pred_fallthru
      _
    %v23 = vld [vmem:[#allocation2] sm:$0xff]
    %v24 = vld [vmem:[#allocation2 + $0x8] sm:$0xff]
    %v25 = vmin.f32 %v23, 20.0
    %v26 = vmin.f32 %v24, 20.0
    %v27 = vmul.f32 %v25, 1.442695
    %v28 = vpow.pop %v27
    %v29 = vmul.f32 %v26, 1.442695
    %v30 = vpow.pop %v29
    %v31 = vadd.f32 %v28, 2.0
    %v32 = vadd.f32 %v30, 2.0
    %v33 = vmul.f32 %v28, %v31
    %v34 = vmul.f32 %v30, %v32
    %vm35 = vcmp.gt.f32.partialorder %v23, 20.0
    %vm36 = vcmp.gt.f32.partialorder %v24, 20.0
    %v37 = vmul.f32 %v23, %v33
    %v38 = vmul.f32 %v24, %v34
    %v39 = vadd.f32 %v33, 2.0
    %v40 = vadd.f32 %v34, 2.0
    %v41 = vrcp.pop %v39
    %v42 = vmul.f32 %v37, %v41
    %v43 = vrcp.pop %v40
    %v44 = vmul.f32 %v38, %v43
    %v45 = vsel %vm35, %v23, %v42
    %v46 = vsel %vm36, %v24, %v44
    %47 = vst [vmem:[#allocation5] sm:$0xff] %v45
    %48 = vst [vmem:[#allocation5 + $0x8] sm:$0xff] %v46
    // Predicated region
    $region10: #{tpu_custom_call.1} parent=1 // pred_check
      _
    $region11: #{tpu_custom_call.1} parent=1 // pred_check_branch
      %50 = sbr.rel (0) target = $region13
    $region12: #{tpu_custom_call.1} parent=1 // pred_region
      %s52 = ssub.s32 256, 256
      %53 = vsyncadd [#allocation4], %s52
      %s54 = sshll.u32 [#allocation5], 4
      %s55 = int_to_ptr.vmem [resolvable:$true] %s54
      %60 = dma.vmem_to_hbm [thread:$0]  %s55, 256, %s1, [#allocation4], 128, 128, 8
    $region13: #{tpu_custom_call.1} parent=1 // pred_fallthru
      _
    // Predicated region
    $region14: #{tpu_custom_call.1} parent=1 // pred_check
      _
    $region15: #{tpu_custom_call.1} parent=1 // pred_check_branch
      %62 = sbr.rel (0) target = $region17
    $region16: #{tpu_custom_call.1} parent=1 // pred_region
      %63 = dma.done [#allocation4], 256
    $region17: #{tpu_custom_call.1} parent=1 // pred_fallthru
      _
    %64 = vsyncpa [#allocation3], 1
    %65 = vsyncpa [#allocation4], 1

</llo_original>
